<compile_context>
chip_gen: v5e
topology: v5e:2x2
jax: 0.10.0
libtpu: 0.0.40
codegen_flags: <defaults>
</compile_context>

<pallas_src>
import functools

import jax
import jax.numpy as jnp
from jax.experimental import pallas as pl
from jax.experimental.pallas import tpu as pltpu


def _round_up(x, m):
    return ((x + m - 1) // m) * m


def _mlp_kernel(n_layers, x_ref, *refs):
    """Fused Linear+ReLU stack over one tile of rows.

    refs = (w0, b0, w1, b1, ..., w_{L-1}, b_{L-1}, out_ref)
    """
    out_ref = refs[-1]
    params = refs[:-1]

    x = x_ref[...]  # (TM, C_in) f32
    for l in range(n_layers):
        w = params[2 * l][...]        # (C_in, C_out)
        b = params[2 * l + 1][...]    # (1, C_out)
        x = jnp.maximum(
            jnp.dot(x, w, preferred_element_type=jnp.float32) + b, 0.0
        )
        # TODO(synk): training-mode dropout mask would be applied here.
    out_ref[...] = x


def aux_struct_enc_mlp_forward(data, weights, biases, *, tile_m=2048):
    """Pallas implementation of AuxStructEncMLP.forward (inference).

    data    : dict with 'pos' (N, C_in) and boolean 'cell_mask' (N,);
              graph fields are ignored (unused by the module's forward).
    weights : list of (C_in, C_out) matrices (transposed torch Linear weights)
    biases  : list of (1, C_out) row vectors
    returns : h of shape (num_masked_rows, C_last), float32
    """
    x = jnp.asarray(data["pos"], jnp.float32)
    cell_mask = data["cell_mask"]
    x_cells = x[cell_mask]            # glue: eager boolean gather, data-dependent M
    m, c_in = x_cells.shape
    c_out = weights[-1].shape[1]
    n_layers = len(weights)

    # Row tile: big enough to amortize per-grid-step overhead, multiple of 8
    # sublanes; on large inputs keep >= ~8 grid steps so megacore/2-TC chips
    # (v7x) have parallel work.
    m8 = _round_up(max(m, 1), 8)
    tm = min(tile_m, m8)
    if m8 >= 8 * 512:
        tm = min(tm, _round_up(-(-m8 // 8), 8))
    tm = max(8, (tm // 8) * 8)
    m_pad = _round_up(max(m, 1), tm)

    x_pad = jnp.zeros((m_pad, c_in), jnp.float32).at[:m].set(x_cells)

    # Full (untiled) blocks for the small weight / bias matrices.
    in_specs = [pl.BlockSpec((tm, c_in), lambda i: (i, 0))]
    args = [x_pad]
    for w, b in zip(weights, biases):
        in_specs.append(pl.BlockSpec(w.shape, lambda i: (0, 0)))
        in_specs.append(pl.BlockSpec(b.shape, lambda i: (0, 0)))
        args.append(w.astype(jnp.float32))
        args.append(b.astype(jnp.float32))

    grid_spec = pltpu.PrefetchScalarGridSpec(
        num_scalar_prefetch=0,
        grid=(m_pad // tm,),
        in_specs=in_specs,
        out_specs=pl.BlockSpec((tm, c_out), lambda i: (i, 0)),
    )

    out = pl.pallas_call(
        functools.partial(_mlp_kernel, n_layers),
        out_shape=jax.ShapeDtypeStruct((m_pad, c_out), jnp.float32),
        grid_spec=grid_spec,
        compiler_params=pltpu.CompilerParams(
            dimension_semantics=("parallel",)
        ),
    )(*args)

    return out[:m]


def _reference_forward(data, weights, biases):
    """Pure-JAX reference matching the PyTorch semantics (eval mode)."""
    h = jnp.asarray(data["pos"], jnp.float32)[data["cell_mask"]]
    for w, b in zip(weights, biases):
        h = jnp.maximum(h @ w + b, 0.0)
    return h


def _init_params(key, in_channels, layer_out_chnls):
    """Deterministic synthetic parameters (Linear == dense, W stored (in, out))."""
    weights, biases = [], []
    prev = in_channels
    for out_c in layer_out_chnls:
        key, kw, kb = jax.random.split(key, 3)
        w = jax.random.normal(kw, (prev, out_c), dtype=jnp.float32) * 0.1
        b = jax.random.normal(kb, (1, out_c), dtype=jnp.float32) * 0.01
        weights.append(w)
        biases.append(b)
        prev = out_c
    return weights, biases


if __name__ == "__main__":
    key = jax.random.PRNGKey(0)
    k_x, k_m, k_p = jax.random.split(key, 3)

    num_nodes = 300
    in_channels = 4
    aux_struct_enc_layers_out_chnls = [32, 16]

    pos = jax.random.normal(k_x, (num_nodes, in_channels), dtype=jnp.float32)
    cell_mask = jax.random.uniform(k_m, (num_nodes,)) < 0.7
    data = {
        "pos": pos,
        "cell_mask": cell_mask,
        # present only to mirror the data object; unused by forward
        "edge_index": jnp.zeros((2, 1), jnp.int32),
        "edge_attr": jnp.ones((1,), jnp.float32),
        "edge_norm": jnp.ones((1,), jnp.float32),
        "edge_type": jnp.zeros((1,), jnp.int32),
    }
    weights, biases = _init_params(k_p, in_channels, aux_struct_enc_layers_out_chnls)

    h = aux_struct_enc_mlp_forward(data, weights, biases)
    h = jax.block_until_ready(h)

    ref = _reference_forward(data, weights, biases)
    assert h.shape == ref.shape
    assert h.shape[1] == aux_struct_enc_layers_out_chnls[-1]
    assert jnp.allclose(h, ref, atol=1e-5, rtol=1e-5)

    print("KERNEL_OK")
</pallas_src>

<mosaic_0001>
module attributes {stable_mosaic.version = 11 : i64} {
  func.func @_mlp_kernel(%arg0: i32, %arg1: memref<216x4xf32, #tpu.memory_space<vmem>>, %arg2: memref<4x32xf32, #tpu.memory_space<vmem>>, %arg3: memref<1x32xf32, #tpu.memory_space<vmem>>, %arg4: memref<32x16xf32, #tpu.memory_space<vmem>>, %arg5: memref<1x16xf32, #tpu.memory_space<vmem>>, %arg6: memref<216x16xf32, #tpu.memory_space<vmem>>) attributes {dimension_semantics = [#tpu.dimension_semantics<parallel>], iteration_bounds = array<i64: 1>, scalar_prefetch = 0 : i64, scratch_operands = 0 : i64, tpu.core_type = #tpu.core_type<tc>, window_params = [{transform_indices = @transform_0, window_bounds = array<i64: 216, 4>}, {pipeline_mode = #tpu.pipeline_mode<synchronous>, transform_indices = @transform_1, window_bounds = array<i64: 4, 32>}, {pipeline_mode = #tpu.pipeline_mode<synchronous>, transform_indices = @transform_2, window_bounds = array<i64: 1, 32>}, {pipeline_mode = #tpu.pipeline_mode<synchronous>, transform_indices = @transform_3, window_bounds = array<i64: 32, 16>}, {pipeline_mode = #tpu.pipeline_mode<synchronous>, transform_indices = @transform_4, window_bounds = array<i64: 1, 16>}, {transform_indices = @transform_5, window_bounds = array<i64: 216, 16>}]} {
    %c0 = arith.constant 0 : index
    %c0_0 = arith.constant 0 : index
    %0 = vector.load %arg1[%c0, %c0_0] : memref<216x4xf32, #tpu.memory_space<vmem>>, vector<216x4xf32>
    %c0_1 = arith.constant 0 : index
    %c0_2 = arith.constant 0 : index
    %1 = vector.load %arg2[%c0_1, %c0_2] : memref<4x32xf32, #tpu.memory_space<vmem>>, vector<4x32xf32>
    %c0_3 = arith.constant 0 : index
    %c0_4 = arith.constant 0 : index
    %2 = vector.load %arg3[%c0_3, %c0_4] : memref<1x32xf32, #tpu.memory_space<vmem>>, vector<1x32xf32>
    %cst = arith.constant dense<0.000000e+00> : vector<216x32xf32>
    %3 = tpu.matmul %0, %1, %cst {dimension_numbers = #tpu.dot_dimension_numbers<[1], [0], [0], [1], [0, 0, 1, 1], [], []>} : vector<216x4xf32>, vector<4x32xf32>, vector<216x32xf32> -> vector<216x32xf32>
    %4 = vector.broadcast %2 : vector<1x32xf32> to vector<216x32xf32>
    %5 = arith.addf %3, %4 : vector<216x32xf32>
    %cst_5 = arith.constant 0.000000e+00 : f32
    %6 = vector.broadcast %cst_5 : f32 to vector<216x32xf32>
    %7 = arith.maximumf %5, %6 : vector<216x32xf32>
    %c0_6 = arith.constant 0 : index
    %c0_7 = arith.constant 0 : index
    %8 = vector.load %arg4[%c0_6, %c0_7] : memref<32x16xf32, #tpu.memory_space<vmem>>, vector<32x16xf32>
    %c0_8 = arith.constant 0 : index
    %c0_9 = arith.constant 0 : index
    %9 = vector.load %arg5[%c0_8, %c0_9] : memref<1x16xf32, #tpu.memory_space<vmem>>, vector<1x16xf32>
    %cst_10 = arith.constant dense<0.000000e+00> : vector<216x16xf32>
    %10 = tpu.matmul %7, %8, %cst_10 {dimension_numbers = #tpu.dot_dimension_numbers<[1], [0], [0], [1], [0, 0, 1, 1], [], []>} : vector<216x32xf32>, vector<32x16xf32>, vector<216x16xf32> -> vector<216x16xf32>
    %11 = vector.broadcast %9 : vector<1x16xf32> to vector<216x16xf32>
    %12 = arith.addf %10, %11 : vector<216x16xf32>
    %cst_11 = arith.constant 0.000000e+00 : f32
    %13 = vector.broadcast %cst_11 : f32 to vector<216x16xf32>
    %14 = arith.maximumf %12, %13 : vector<216x16xf32>
    %c0_12 = arith.constant 0 : index
    %c0_13 = arith.constant 0 : index
    %15 = vector.load %arg6[%c0_12, %c0_13] : memref<216x16xf32, #tpu.memory_space<vmem>>, vector<216x16xf32>
    tpu.vector_store %arg6[%c0_12, %c0_13], %14 {strides = array<i32>} : memref<216x16xf32, #tpu.memory_space<vmem>>, vector<216x16xf32>,
    return
  }
  func.func @transform_0(%arg0: i32) -> (i32, i32) {
    %c0_i32 = arith.constant 0 : i32
    %c0_i32_0 = arith.constant 0 : i32
    return %arg0, %c0_i32 : i32, i32
  }
  func.func @transform_1(%arg0: i32) -> (i32, i32) {
    %c0_i32 = arith.constant 0 : i32
    %c0_i32_0 = arith.constant 0 : i32
    %c0_i32_1 = arith.constant 0 : i32
    return %c0_i32, %c0_i32_0 : i32, i32
  }
  func.func @transform_2(%arg0: i32) -> (i32, i32) {
    %c0_i32 = arith.constant 0 : i32
    %c0_i32_0 = arith.constant 0 : i32
    %c0_i32_1 = arith.constant 0 : i32
    return %c0_i32, %c0_i32_0 : i32, i32
  }
  func.func @transform_3(%arg0: i32) -> (i32, i32) {
    %c0_i32 = arith.constant 0 : i32
    %c0_i32_0 = arith.constant 0 : i32
    %c0_i32_1 = arith.constant 0 : i32
    return %c0_i32, %c0_i32_0 : i32, i32
  }
  func.func @transform_4(%arg0: i32) -> (i32, i32) {
    %c0_i32 = arith.constant 0 : i32
    %c0_i32_0 = arith.constant 0 : i32
    %c0_i32_1 = arith.constant 0 : i32
    return %c0_i32, %c0_i32_0 : i32, i32
  }
  func.func @transform_5(%arg0: i32) -> (i32, i32) {
    %c0_i32 = arith.constant 0 : i32
    %c0_i32_0 = arith.constant 0 : i32
    return %arg0, %c0_i32 : i32, i32
  }
}

</mosaic_0001>

<llo_original>
// kernel: tpu_custom_call.1
$region0: #{tpu_custom_call.1}
  #allocation0 [shape = 'u32[]', space=smem, size = 0x4, offset = 0x4, fixed_abs, tag = 'smem constant byte address 0x4 - core index']
  #allocation1 [shape = 'u32[72,128]{1,0:T(1,128)}', space=vmem, size = 0x9000, scoped, tag = 'internal scratch']
  %s0 = inlined_call_operand.vmem [shape: f32[216,4], index: 0, kind: input, shape index: {}]
  %s1 = inlined_call_operand.vmem [shape: f32[4,32], index: 1, kind: input, shape index: {}]
  %s2 = inlined_call_operand.vmem [shape: f32[1,32], index: 2, kind: input, shape index: {}]
  %s3 = inlined_call_operand.vmem [shape: f32[32,16], index: 3, kind: input, shape index: {}]
  %s4 = inlined_call_operand.vmem [shape: f32[1,16], index: 4, kind: input, shape index: {}]
  %s5 = inlined_call_operand.vmem [shape: f32[216,16], index: 5, kind: output, shape index: {}]
  %s6 = sld [smem:[#allocation0]]
  $region30: #{tpu_custom_call.1} parent=0
    _
  %s8 = ssub.s32 1, %s6
  %s9 = scalar_select 0, %s8, %s6
  // Predicated region
  $region2: #{tpu_custom_call.1} parent=0 // pred_check
    _
  $region3: #{tpu_custom_call.1} parent=0 // pred_check_branch
    %11 = sbr.rel (0) target = $region5
  $region4: #{tpu_custom_call.1} parent=0 // pred_region
    _
  $region5: #{tpu_custom_call.1} parent=0 // pred_fallthru
    _
  // Predicated region
  $region6: #{tpu_custom_call.1} parent=0 // pred_check
    _
  $region7: #{tpu_custom_call.1} parent=0 // pred_check_branch
    %13 = sbr.rel (0) target = $region9
  $region8: #{tpu_custom_call.1} parent=0 // pred_region
    _
  $region9: #{tpu_custom_call.1} parent=0 // pred_fallthru
    _
  // Predicated region
  $region10: #{tpu_custom_call.1} parent=0 // pred_check
    _
  $region11: #{tpu_custom_call.1} parent=0 // pred_check_branch
    %15 = sbr.rel (0) target = $region13
  $region12: #{tpu_custom_call.1} parent=0 // pred_region
    _
  $region13: #{tpu_custom_call.1} parent=0 // pred_fallthru
    _
  // Predicated region
  $region14: #{tpu_custom_call.1} parent=0 // pred_check
    _
  $region15: #{tpu_custom_call.1} parent=0 // pred_check_branch
    %17 = sbr.rel (0) target = $region17
  $region16: #{tpu_custom_call.1} parent=0 // pred_region
    _
  $region17: #{tpu_custom_call.1} parent=0 // pred_fallthru
    _
  // Predicated region
  $region18: #{tpu_custom_call.1} parent=0 // pred_check
    _
  $region19: #{tpu_custom_call.1} parent=0 // pred_check_branch
    %19 = sbr.rel (0) target = $region21
  $region20: #{tpu_custom_call.1} parent=0 // pred_region
    _
  $region21: #{tpu_custom_call.1} parent=0 // pred_fallthru
    _
  %v20 = vld [vmem:[%s0] sm:$0xff]
  %v21 = vld [vmem:[%s0 + $0x8] sm:$0xff]
  %v22 = vld [vmem:[%s0 + $0x10] sm:$0xff]
  %v23 = vld [vmem:[%s0 + $0x18] sm:$0xff]
  %v24 = vld [vmem:[%s0 + $0x20] sm:$0xff]
  %v25 = vld [vmem:[%s0 + $0x28] sm:$0xff]
  %v26 = vld [vmem:[%s0 + $0x30] sm:$0xff]
  %v27 = vld [vmem:[%s0 + $0x38] sm:$0xff]
  %v28 = vld [vmem:[%s0 + $0x40] sm:$0xff]
  %v29 = vld [vmem:[%s0 + $0x48] sm:$0xff]
  %v30 = vld [vmem:[%s0 + $0x50] sm:$0xff]
  %v31 = vld [vmem:[%s0 + $0x58] sm:$0xff]
  %v32 = vld [vmem:[%s0 + $0x60] sm:$0xff]
  %v33 = vld [vmem:[%s0 + $0x68] sm:$0xff]
  %v34 = vld [vmem:[%s0 + $0x70] sm:$0xff]
  %v35 = vld [vmem:[%s0 + $0x78] sm:$0xff]
  %v36 = vld [vmem:[%s0 + $0x80] sm:$0xff]
  %v37 = vld [vmem:[%s0 + $0x88] sm:$0xff]
  %v38 = vld [vmem:[%s0 + $0x90] sm:$0xff]
  %v39 = vld [vmem:[%s0 + $0x98] sm:$0xff]
  %v40 = vld [vmem:[%s0 + $0xa0] sm:$0xff]
  %v41 = vld [vmem:[%s0 + $0xa8] sm:$0xff]
  %v42 = vld [vmem:[%s0 + $0xb0] sm:$0xff]
  %v43 = vld [vmem:[%s0 + $0xb8] sm:$0xff]
  %v44 = vld [vmem:[%s0 + $0xc0] sm:$0xff]
  %v45 = vld [vmem:[%s0 + $0xc8] sm:$0xff]
  %v46 = vld [vmem:[%s0 + $0xd0] sm:$0xff]
  %v47 = vld [vmem:[%s1] sm:$0xf]
  %v48 = vld [vmem:[%s2] sm:$0x1]
  %v50 = vperm.slane %v48, 0
  %vm52 = vcmask 31744
  %v54 = vsel %vm52, %v20, 0
  %v57 = vsel %vm52, %v21, 0
  %v60 = vsel %vm52, %v22, 0
  %v63 = vsel %vm52, %v23, 0
  %v66 = vsel %vm52, %v24, 0
  %v69 = vsel %vm52, %v25, 0
  %v72 = vsel %vm52, %v26, 0
  %v75 = vsel %vm52, %v27, 0
  %v78 = vsel %vm52, %v28, 0
  %v81 = vsel %vm52, %v29, 0
  %v84 = vsel %vm52, %v30, 0
  %v87 = vsel %vm52, %v31, 0
  %v90 = vsel %vm52, %v32, 0
  %v93 = vsel %vm52, %v33, 0
  %v96 = vsel %vm52, %v34, 0
  %v99 = vsel %vm52, %v35, 0
  %v102 = vsel %vm52, %v36, 0
  %v105 = vsel %vm52, %v37, 0
  %v108 = vsel %vm52, %v38, 0
  %v111 = vsel %vm52, %v39, 0
  %v114 = vsel %vm52, %v40, 0
  %v117 = vsel %vm52, %v41, 0
  %v120 = vsel %vm52, %v42, 0
  %v123 = vsel %vm52, %v43, 0
  %v126 = vsel %vm52, %v44, 0
  %v129 = vsel %vm52, %v45, 0
  %v132 = vsel %vm52, %v46, 0
  %vm134 = vcmask 1043456
  %v136 = vsel %vm134, %v47, 0
  %138 = vmatpush.msra.mxu0 0.0
  %139 = vmatpush.msra.mxu0 0.0
  %140 = vmatpush.msra.mxu0 0.0
  %141 = vmatpush.msra.mxu0 0.0
  %142 = vmatpush.msra.mxu0 0.0
  %143 = vmatpush.msra.mxu0 0.0
  %144 = vmatpush.msra.mxu0 0.0
  %145 = vmatpush.msra.mxu0 0.0
  %146 = vmatpush.msra.mxu0 0.0
  %147 = vmatpush.msra.mxu0 0.0
  %148 = vmatpush.msra.mxu0 0.0
  %149 = vmatpush.msra.mxu0 0.0
  %150 = vmatpush.msra.mxu0 0.0
  %151 = vmatpush.msra.mxu0 0.0
  %152 = vmatpush.msra.mxu0 0.0
  %153 = vmatpush.msra.mxu0 %v136
  %154 = vmatmul.f32.gmra.mxu0 %v54
  %v155 = vpop.f32.mrf.mxu0
  %v156 = vadd.f32 %v50, %v155
  %157 = vmatmul.f32.gmra.mxu0 %v57
  %v158 = vpop.f32.mrf.mxu0
  %v159 = vadd.f32 %v50, %v158
  %160 = vmatmul.f32.gmra.mxu0 %v60
  %v161 = vpop.f32.mrf.mxu0
  %v162 = vadd.f32 %v50, %v161
  %163 = vmatmul.f32.gmra.mxu0 %v63
  %v164 = vpop.f32.mrf.mxu0
  %v165 = vadd.f32 %v50, %v164
  %166 = vmatmul.f32.gmra.mxu0 %v66
  %v167 = vpop.f32.mrf.mxu0
  %v168 = vadd.f32 %v50, %v167
  %169 = vmatmul.f32.gmra.mxu0 %v69
  %v170 = vpop.f32.mrf.mxu0
  %v171 = vadd.f32 %v50, %v170
  %172 = vmatmul.f32.gmra.mxu0 %v72
  %v173 = vpop.f32.mrf.mxu0
  %v174 = vadd.f32 %v50, %v173
  %175 = vmatmul.f32.gmra.mxu0 %v75
  %v176 = vpop.f32.mrf.mxu0
  %v177 = vadd.f32 %v50, %v176
  %178 = vmatmul.f32.gmra.mxu0 %v78
  %v179 = vpop.f32.mrf.mxu0
  %v180 = vadd.f32 %v50, %v179
  %181 = vmatmul.f32.gmra.mxu0 %v81
  %v182 = vpop.f32.mrf.mxu0
  %v183 = vadd.f32 %v50, %v182
  %184 = vmatmul.f32.gmra.mxu0 %v84
  %v185 = vpop.f32.mrf.mxu0
  %v186 = vadd.f32 %v50, %v185
  %187 = vmatmul.f32.gmra.mxu0 %v87
  %v188 = vpop.f32.mrf.mxu0
  %v189 = vadd.f32 %v50, %v188
  %190 = vmatmul.f32.gmra.mxu0 %v90
  %v191 = vpop.f32.mrf.mxu0
  %v192 = vadd.f32 %v50, %v191
  %193 = vmatmul.f32.gmra.mxu0 %v93
  %v194 = vpop.f32.mrf.mxu0
  %v195 = vadd.f32 %v50, %v194
  %196 = vmatmul.f32.gmra.mxu0 %v96
  %v197 = vpop.f32.mrf.mxu0
  %v198 = vadd.f32 %v50, %v197
  %199 = vmatmul.f32.gmra.mxu0 %v99
  %v200 = vpop.f32.mrf.mxu0
  %v201 = vadd.f32 %v50, %v200
  %202 = vmatmul.f32.gmra.mxu0 %v102
  %v203 = vpop.f32.mrf.mxu0
  %v204 = vadd.f32 %v50, %v203
  %205 = vmatmul.f32.gmra.mxu0 %v105
  %v206 = vpop.f32.mrf.mxu0
  %v207 = vadd.f32 %v50, %v206
  %208 = vmatmul.f32.gmra.mxu0 %v108
  %v209 = vpop.f32.mrf.mxu0
  %v210 = vadd.f32 %v50, %v209
  %211 = vmatmul.f32.gmra.mxu0 %v111
  %v212 = vpop.f32.mrf.mxu0
  %v213 = vadd.f32 %v50, %v212
  %214 = vmatmul.f32.gmra.mxu0 %v114
  %v215 = vpop.f32.mrf.mxu0
  %v216 = vadd.f32 %v50, %v215
  %217 = vmatmul.f32.gmra.mxu0 %v117
  %v218 = vpop.f32.mrf.mxu0
  %v219 = vadd.f32 %v50, %v218
  %220 = vmatmul.f32.gmra.mxu0 %v120
  %v221 = vpop.f32.mrf.mxu0
  %v222 = vadd.f32 %v50, %v221
  %223 = vmatmul.f32.gmra.mxu0 %v123
  %v224 = vpop.f32.mrf.mxu0
  %v225 = vadd.f32 %v50, %v224
  %226 = vmatmul.f32.gmra.mxu0 %v126
  %v227 = vpop.f32.mrf.mxu0
  %v228 = vadd.f32 %v50, %v227
  %229 = vmatmul.f32.gmra.mxu0 %v129
  %v230 = vpop.f32.mrf.mxu0
  %v231 = vadd.f32 %v50, %v230
  %232 = vmatmul.f32.gmra.mxu0 %v132
  %v233 = vpop.f32.mrf.mxu0
  %v234 = vadd.f32 %v50, %v233
  %235 = vdwg.mxu0
  %v236 = vmax.f32 %v156, 0.0
  %v237 = vmax.f32 %v159, 0.0
  %v238 = vmax.f32 %v162, 0.0
  %v239 = vmax.f32 %v165, 0.0
  %v240 = vmax.f32 %v168, 0.0
  %v241 = vmax.f32 %v171, 0.0
  %v242 = vmax.f32 %v174, 0.0
  %v243 = vmax.f32 %v177, 0.0
  %v244 = vmax.f32 %v180, 0.0
  %v245 = vmax.f32 %v183, 0.0
  %v246 = vmax.f32 %v186, 0.0
  %v247 = vmax.f32 %v189, 0.0
  %v248 = vmax.f32 %v192, 0.0
  %v249 = vmax.f32 %v195, 0.0
  %v250 = vmax.f32 %v198, 0.0
  %v251 = vmax.f32 %v201, 0.0
  %v252 = vmax.f32 %v204, 0.0
  %v253 = vmax.f32 %v207, 0.0
  %v254 = vmax.f32 %v210, 0.0
  %v255 = vmax.f32 %v213, 0.0
  %v256 = vmax.f32 %v216, 0.0
  %v257 = vmax.f32 %v219, 0.0
  %v258 = vmax.f32 %v222, 0.0
  %v259 = vmax.f32 %v225, 0.0
  %v260 = vmax.f32 %v228, 0.0
  %v261 = vmax.f32 %v231, 0.0
  %v262 = vmax.f32 %v234, 0.0
  %v263 = vld [vmem:[%s3] sm:$0xff]
  %v264 = vld [vmem:[%s3 + $0x8] sm:$0xff]
  %v265 = vld [vmem:[%s3 + $0x10] sm:$0xff]
  %v266 = vld [vmem:[%s3 + $0x18] sm:$0xff]
  %v267 = vld [vmem:[%s4] sm:$0x1]
  %v269 = vperm.slane %v267, 0
  %vm271 = vcmask 261120
  %v273 = vsel %vm271, %v236, 0
  %v276 = vsel %vm271, %v237, 0
  %v279 = vsel %vm271, %v238, 0
  %v282 = vsel %vm271, %v239, 0
  %v285 = vsel %vm271, %v240, 0
  %v288 = vsel %vm271, %v241, 0
  %v291 = vsel %vm271, %v242, 0
  %v294 = vsel %vm271, %v243, 0
  %v297 = vsel %vm271, %v244, 0
  %v300 = vsel %vm271, %v245, 0
  %v303 = vsel %vm271, %v246, 0
  %v306 = vsel %vm271, %v247, 0
  %v309 = vsel %vm271, %v248, 0
  %v312 = vsel %vm271, %v249, 0
  %v315 = vsel %vm271, %v250, 0
  %v318 = vsel %vm271, %v251, 0
  %v321 = vsel %vm271, %v252, 0
  %v324 = vsel %vm271, %v253, 0
  %v327 = vsel %vm271, %v254, 0
  %v330 = vsel %vm271, %v255, 0
  %v333 = vsel %vm271, %v256, 0
  %v336 = vsel %vm271, %v257, 0
  %v339 = vsel %vm271, %v258, 0
  %v342 = vsel %vm271, %v259, 0
  %v345 = vsel %vm271, %v260, 0
  %v348 = vsel %vm271, %v261, 0
  %v351 = vsel %vm271, %v262, 0
  %353 = vmatpush.msra.mxu0 0.0
  %354 = vmatpush.msra.mxu0 0.0
  %355 = vmatpush.msra.mxu0 0.0
  %356 = vmatpush.msra.mxu0 0.0
  %357 = vmatpush.msra.mxu0 0.0
  %358 = vmatpush.msra.mxu0 0.0
  %359 = vmatpush.msra.mxu0 0.0
  %360 = vmatpush.msra.mxu0 0.0
  %361 = vmatpush.msra.mxu0 0.0
  %362 = vmatpush.msra.mxu0 0.0
  %363 = vmatpush.msra.mxu0 0.0
  %364 = vmatpush.msra.mxu0 0.0
  %365 = vmatpush.msra.mxu0 %v266
  %366 = vmatpush.msra.mxu0 %v265
  %367 = vmatpush.msra.mxu0 %v264
  %368 = vmatpush.msra.mxu0 %v263
  %369 = vmatmul.f32.gmra.mxu0 %v273
  %v370 = vpop.f32.mrf.mxu0
  %v371 = vadd.f32 %v269, %v370
  %372 = vmatmul.f32.gmra.mxu0 %v276
  %v373 = vpop.f32.mrf.mxu0
  %v374 = vadd.f32 %v269, %v373
  %375 = vmatmul.f32.gmra.mxu0 %v279
  %v376 = vpop.f32.mrf.mxu0
  %v377 = vadd.f32 %v269, %v376
  %378 = vmatmul.f32.gmra.mxu0 %v282
  %v379 = vpop.f32.mrf.mxu0
  %v380 = vadd.f32 %v269, %v379
  %381 = vmatmul.f32.gmra.mxu0 %v285
  %v382 = vpop.f32.mrf.mxu0
  %v383 = vadd.f32 %v269, %v382
  %384 = vmatmul.f32.gmra.mxu0 %v288
  %v385 = vpop.f32.mrf.mxu0
  %v386 = vadd.f32 %v269, %v385
  %387 = vmatmul.f32.gmra.mxu0 %v291
  %v388 = vpop.f32.mrf.mxu0
  %v389 = vadd.f32 %v269, %v388
  %390 = vmatmul.f32.gmra.mxu0 %v294
  %v391 = vpop.f32.mrf.mxu0
  %v392 = vadd.f32 %v269, %v391
  %393 = vmatmul.f32.gmra.mxu0 %v297
  %v394 = vpop.f32.mrf.mxu0
  %v395 = vadd.f32 %v269, %v394
  %396 = vmatmul.f32.gmra.mxu0 %v300
  %v397 = vpop.f32.mrf.mxu0
  %v398 = vadd.f32 %v269, %v397
  %399 = vmatmul.f32.gmra.mxu0 %v303
  %v400 = vpop.f32.mrf.mxu0
  %v401 = vadd.f32 %v269, %v400
  %402 = vmatmul.f32.gmra.mxu0 %v306
  %v403 = vpop.f32.mrf.mxu0
  %v404 = vadd.f32 %v269, %v403
  %405 = vmatmul.f32.gmra.mxu0 %v309
  %v406 = vpop.f32.mrf.mxu0
  %v407 = vadd.f32 %v269, %v406
  %408 = vmatmul.f32.gmra.mxu0 %v312
  %v409 = vpop.f32.mrf.mxu0
  %v410 = vadd.f32 %v269, %v409
  %411 = vmatmul.f32.gmra.mxu0 %v315
  %v412 = vpop.f32.mrf.mxu0
  %v413 = vadd.f32 %v269, %v412
  %414 = vmatmul.f32.gmra.mxu0 %v318
  %v415 = vpop.f32.mrf.mxu0
  %v416 = vadd.f32 %v269, %v415
  %417 = vmatmul.f32.gmra.mxu0 %v321
  %v418 = vpop.f32.mrf.mxu0
  %v419 = vadd.f32 %v269, %v418
  %420 = vmatmul.f32.gmra.mxu0 %v324
  %v421 = vpop.f32.mrf.mxu0
  %v422 = vadd.f32 %v269, %v421
  %423 = vmatmul.f32.gmra.mxu0 %v327
  %v424 = vpop.f32.mrf.mxu0
  %v425 = vadd.f32 %v269, %v424
  %426 = vmatmul.f32.gmra.mxu0 %v330
  %v427 = vpop.f32.mrf.mxu0
  %v428 = vadd.f32 %v269, %v427
  %429 = vmatmul.f32.gmra.mxu0 %v333
  %v430 = vpop.f32.mrf.mxu0
  %v431 = vadd.f32 %v269, %v430
  %432 = vmatmul.f32.gmra.mxu0 %v336
  %v433 = vpop.f32.mrf.mxu0
  %v434 = vadd.f32 %v269, %v433
  %435 = vmatmul.f32.gmra.mxu0 %v339
  %v436 = vpop.f32.mrf.mxu0
  %v437 = vadd.f32 %v269, %v436
  %438 = vmatmul.f32.gmra.mxu0 %v342
  %v439 = vpop.f32.mrf.mxu0
  %v440 = vadd.f32 %v269, %v439
  %441 = vmatmul.f32.gmra.mxu0 %v345
  %v442 = vpop.f32.mrf.mxu0
  %v443 = vadd.f32 %v269, %v442
  %444 = vmatmul.f32.gmra.mxu0 %v348
  %v445 = vpop.f32.mrf.mxu0
  %v446 = vadd.f32 %v269, %v445
  %447 = vmatmul.f32.gmra.mxu0 %v351
  %v448 = vpop.f32.mrf.mxu0
  %v449 = vadd.f32 %v269, %v448
  %450 = vdwg.mxu0
  %v451 = vmax.f32 %v371, 0.0
  %v452 = vmax.f32 %v374, 0.0
  %v453 = vmax.f32 %v377, 0.0
  %v454 = vmax.f32 %v380, 0.0
  %v455 = vmax.f32 %v383, 0.0
  %v456 = vmax.f32 %v386, 0.0
  %v457 = vmax.f32 %v389, 0.0
  %v458 = vmax.f32 %v392, 0.0
  %v459 = vmax.f32 %v395, 0.0
  %v460 = vmax.f32 %v398, 0.0
  %v461 = vmax.f32 %v401, 0.0
  %v462 = vmax.f32 %v404, 0.0
  %v463 = vmax.f32 %v407, 0.0
  %v464 = vmax.f32 %v410, 0.0
  %v465 = vmax.f32 %v413, 0.0
  %v466 = vmax.f32 %v416, 0.0
  %v467 = vmax.f32 %v419, 0.0
  %v468 = vmax.f32 %v422, 0.0
  %v469 = vmax.f32 %v425, 0.0
  %v470 = vmax.f32 %v428, 0.0
  %v471 = vmax.f32 %v431, 0.0
  %v472 = vmax.f32 %v434, 0.0
  %v473 = vmax.f32 %v437, 0.0
  %v474 = vmax.f32 %v440, 0.0
  %v475 = vmax.f32 %v443, 0.0
  %v476 = vmax.f32 %v446, 0.0
  %v477 = vmax.f32 %v449, 0.0
  %vm478 = vcmask 130048
  %479 = vst.msk [vmem:[%s5] sm:$0xff] %vm478, %v451
  %480 = vst.msk [vmem:[%s5 + $0x8] sm:$0xff] %vm478, %v452
  %481 = vst.msk [vmem:[%s5 + $0x10] sm:$0xff] %vm478, %v453
  %482 = vst.msk [vmem:[%s5 + $0x18] sm:$0xff] %vm478, %v454
  %483 = vst.msk [vmem:[%s5 + $0x20] sm:$0xff] %vm478, %v455
  %484 = vst.msk [vmem:[%s5 + $0x28] sm:$0xff] %vm478, %v456
  %485 = vst.msk [vmem:[%s5 + $0x30] sm:$0xff] %vm478, %v457
  %486 = vst.msk [vmem:[%s5 + $0x38] sm:$0xff] %vm478, %v458
  %487 = vst.msk [vmem:[%s5 + $0x40] sm:$0xff] %vm478, %v459
  %488 = vst.msk [vmem:[%s5 + $0x48] sm:$0xff] %vm478, %v460
  %489 = vst.msk [vmem:[%s5 + $0x50] sm:$0xff] %vm478, %v461
  %490 = vst.msk [vmem:[%s5 + $0x58] sm:$0xff] %vm478, %v462
  %491 = vst.msk [vmem:[%s5 + $0x60] sm:$0xff] %vm478, %v463
  %492 = vst.msk [vmem:[%s5 + $0x68] sm:$0xff] %vm478, %v464
  %493 = vst.msk [vmem:[%s5 + $0x70] sm:$0xff] %vm478, %v465
  %494 = vst.msk [vmem:[%s5 + $0x78] sm:$0xff] %vm478, %v466
  %495 = vst.msk [vmem:[%s5 + $0x80] sm:$0xff] %vm478, %v467
  %496 = vst.msk [vmem:[%s5 + $0x88] sm:$0xff] %vm478, %v468
  %497 = vst.msk [vmem:[%s5 + $0x90] sm:$0xff] %vm478, %v469
  %498 = vst.msk [vmem:[%s5 + $0x98] sm:$0xff] %vm478, %v470
  %499 = vst.msk [vmem:[%s5 + $0xa0] sm:$0xff] %vm478, %v471
  %500 = vst.msk [vmem:[%s5 + $0xa8] sm:$0xff] %vm478, %v472
  %501 = vst.msk [vmem:[%s5 + $0xb0] sm:$0xff] %vm478, %v473
  %502 = vst.msk [vmem:[%s5 + $0xb8] sm:$0xff] %vm478, %v474
  %503 = vst.msk [vmem:[%s5 + $0xc0] sm:$0xff] %vm478, %v475
  %504 = vst.msk [vmem:[%s5 + $0xc8] sm:$0xff] %vm478, %v476
  %505 = vst.msk [vmem:[%s5 + $0xd0] sm:$0xff] %vm478, %v477
  // Predicated region
  $region22: #{tpu_custom_call.1} parent=0 // pred_check
    _
  $region23: #{tpu_custom_call.1} parent=0 // pred_check_branch
    %507 = sbr.rel (0) target = $region25
  $region24: #{tpu_custom_call.1} parent=0 // pred_region
    _
  $region25: #{tpu_custom_call.1} parent=0 // pred_fallthru
    _
  // Predicated region
  $region26: #{tpu_custom_call.1} parent=0 // pred_check
    _
  $region27: #{tpu_custom_call.1} parent=0 // pred_check_branch
    %509 = sbr.rel (0) target = $region29
  $region28: #{tpu_custom_call.1} parent=0 // pred_region
    _
  $region29: #{tpu_custom_call.1} parent=0 // pred_fallthru
    _

</llo_original>
